<compile_context>
chip_gen: v6e
topology: v6e:2x2x1
jax: 0.10.0
libtpu: 0.0.40
codegen_flags: <defaults>
</compile_context>

<pallas_src>
import functools
import math

import jax
import jax.numpy as jnp
from jax.experimental import pallas as pl
from jax.experimental.pallas import tpu as pltpu

_VMEM_LIMIT_BYTES = 32 * 1024 * 1024      # safe on v5e/v6e (128 MiB) and v7x (64 MiB)
_GROUP_BYTES_BUDGET = 8 * 1024 * 1024     # per-step tile budget (before double buffering)
_LINEAR_BLOCK_ROWS = 512                  # ~85% of HBM roofline for row-tiled matmul
_MXU_DTYPE = jnp.bfloat16                 # MXU operand dtype; accumulation stays f32


# ------------------------------ small helpers -------------------------------

def _round_up(x, m):
    return (x + m - 1) // m * m


def _largest_divisor_leq(n, cap):
    cap = int(max(1, min(n, cap)))
    for c in range(cap, 0, -1):
        if n % c == 0:
            return c
    return 1


def _pick_group_block(n_groups, bytes_per_group):
    # x2: every in/out tile is double-buffered by the auto-pipeline.
    cap = max(1, _GROUP_BYTES_BUDGET // max(1, 2 * bytes_per_group))
    # keep at least 2 grid steps so the parallel axis can feed both v7x TensorCores
    cap = min(cap, max(1, n_groups // 2))
    return _largest_divisor_leq(n_groups, cap)


# ----------------------------- Pallas kernels --------------------------------

def _linear_kernel(x_ref, w_ref, b_ref, o_ref):
    # x: (TM, Din), w: (Din, Dout), b: (1, Dout)
    o_ref[...] = (jnp.dot(x_ref[...], w_ref[...],
                          preferred_element_type=jnp.float32)
                  + b_ref[...]).astype(o_ref.dtype)


def pallas_linear(x, w, b, *, block_rows=_LINEAR_BLOCK_ROWS):
    """y = x @ w + b.   x: (..., Din), w: (Din, Dout), b: (Dout,)."""
    din = x.shape[-1]
    dout = w.shape[1]
    x2 = x.reshape(-1, din)
    n = x2.shape[0]
    tm = min(block_rows, _round_up(n, 8))          # row tile, multiple of 8 sublanes
    n_pad = _round_up(n, tm)
    if n_pad != n:
        x2 = jnp.pad(x2, ((0, n_pad - n), (0, 0)))
    y = pl.pallas_call(
        _linear_kernel,
        grid=(n_pad // tm,),
        in_specs=[pl.BlockSpec((tm, din), lambda i: (i, 0)),
                  pl.BlockSpec((din, dout), lambda i: (0, 0)),
                  pl.BlockSpec((1, dout), lambda i: (0, 0))],
        out_specs=pl.BlockSpec((tm, dout), lambda i: (i, 0)),
        out_shape=jax.ShapeDtypeStruct((n_pad, dout), jnp.float32),
        compiler_params=pltpu.CompilerParams(
            dimension_semantics=("parallel",),
            vmem_limit_bytes=_VMEM_LIMIT_BYTES),
    )(x2, w, b.reshape(1, dout))
    if n_pad != n:
        y = y[:n]
    return y.reshape(x.shape[:-1] + (dout,))


def _escore_kernel(q_ref, e_ref, o_ref, *, num_heads):
    # q_ref: (Bb, Ts, D)  (query + u, pre-scaled by 1/sqrt(d))
    # e_ref: (1, L, D)    (projected relative positional encodings, shared)
    # o_ref: (Bb, H, Ts, L)
    Bb, Ts, D = q_ref.shape
    L = e_ref.shape[1]
    d = D // num_heads
    for h in range(num_heads):
        lo, hi = h * d, (h + 1) * d
        q_h = q_ref[:, :, lo:hi].reshape(Bb * Ts, d).astype(_MXU_DTYPE)
        e_h = e_ref[0, :, lo:hi].astype(_MXU_DTYPE)              # (L, d)
        s = jax.lax.dot_general(q_h, e_h, (((1,), (1,)), ((), ())),
                                preferred_element_type=jnp.float32)
        o_ref[:, h, :, :] = s.reshape(Bb, Ts, L).astype(o_ref.dtype)


def pallas_rel_scores(q, e, *, num_heads):
    """q: (B, Ts, D), e: (1, L, D) -> per-head rel scores (B, H, Ts, L)."""
    B, Ts, D = q.shape
    L = e.shape[1]
    bytes_per_b = 4 * (Ts * D + num_heads * Ts * L)
    Bb = _pick_group_block(B, bytes_per_b)
    return pl.pallas_call(
        functools.partial(_escore_kernel, num_heads=num_heads),
        grid=(B // Bb,),
        in_specs=[pl.BlockSpec((Bb, Ts, D), lambda i: (i, 0, 0)),
                  pl.BlockSpec((1, L, D), lambda i: (0, 0, 0))],
        out_specs=pl.BlockSpec((Bb, num_heads, Ts, L), lambda i: (i, 0, 0, 0)),
        out_shape=jax.ShapeDtypeStruct((B, num_heads, Ts, L), jnp.float32),
        compiler_params=pltpu.CompilerParams(
            dimension_semantics=("parallel",),
            vmem_limit_bytes=_VMEM_LIMIT_BYTES),
    )(q, e)


def _attn_kernel(qu_ref, k_ref, v_ref, bias_ref, wo_ref, bo_ref,
                 out_ref, attw_ref, *, num_heads):
    # qu_ref  : (Cb, Kq, D)      scrambled, pre-scaled query chunks
    # k_ref   : (Cb, K,  D)      key chunks   (heads still fused in lane axis)
    # v_ref   : (Cb, K,  D)      value chunks
    # bias_ref: (Cb, H, Kq, K)   relative-position scores (already pre-scaled)
    # wo_ref  : (D, D), bo_ref: (1, D)   fused output projection
    # out_ref : (Cb, Kq, D)      lane-dense, head-merged, output-projected
    # attw_ref: (Cb, H, Kq, K)   attention weights
    Cb, Kq, D = qu_ref.shape
    d = D // num_heads
    outs = []
    for h in range(num_heads):
        lo, hi = h * d, (h + 1) * d
        qu_h = qu_ref[:, :, lo:hi].astype(_MXU_DTYPE)            # (Cb, Kq, d)
        k_h = k_ref[:, :, lo:hi].astype(_MXU_DTYPE)              # (Cb, K,  d)
        v_h = v_ref[:, :, lo:hi].astype(_MXU_DTYPE)              # (Cb, K,  d)
        s = jnp.einsum('cqd,ckd->cqk', qu_h, k_h,
                       preferred_element_type=jnp.float32)       # (Cb, Kq, K)
        s = s + bias_ref[:, h, :, :]
        m = jnp.max(s, axis=-1, keepdims=True)
        p = jnp.exp(s - m)
        inv = pl.reciprocal(jnp.sum(p, axis=-1, keepdims=True), approx=True)
        att = p * inv
        attw_ref[:, h, :, :] = att.astype(attw_ref.dtype)
        outs.append(jnp.einsum('cqk,ckd->cqd', att.astype(_MXU_DTYPE), v_h,
                               preferred_element_type=jnp.float32))
    # lane-dense head re-merge (== reference's out.transpose(2,3).reshape),
    # then the fused output projection while the tile is still in VMEM/vregs.
    merged = jnp.concatenate(outs, axis=-1)                      # (Cb, Kq, D) f32
    proj = jnp.dot(merged.reshape(Cb * Kq, D), wo_ref[...],
                   preferred_element_type=jnp.float32) + bo_ref[...]
    out_ref[...] = proj.reshape(Cb, Kq, D).astype(out_ref.dtype)


def pallas_local_attention(qu, k, v, bias, wo, bo, *, num_heads):
    """qu: (BC, Kq, D), k/v: (BC, K, D), bias: (BC, H, Kq, K), wo: (D, D), bo: (D,).
    Returns out (already output-projected): (BC, Kq, D), att_w: (BC, H, Kq, K)."""
    BC, Kq, D = qu.shape
    K = k.shape[1]
    H = num_heads
    bytes_per_chunk = 4 * (2 * Kq * D + 2 * K * D + 2 * H * Kq * K)
    Cb = _pick_group_block(BC, bytes_per_chunk)
    # TODO(synk): att_w could be emitted as bf16 (or dropped) to halve HBM writes.
    out, att = pl.pallas_call(
        functools.partial(_attn_kernel, num_heads=H),
        grid=(BC // Cb,),
        in_specs=[pl.BlockSpec((Cb, Kq, D), lambda i: (i, 0, 0)),
                  pl.BlockSpec((Cb, K, D), lambda i: (i, 0, 0)),
                  pl.BlockSpec((Cb, K, D), lambda i: (i, 0, 0)),
                  pl.BlockSpec((Cb, H, Kq, K), lambda i: (i, 0, 0, 0)),
                  pl.BlockSpec((D, D), lambda i: (0, 0)),
                  pl.BlockSpec((1, D), lambda i: (0, 0))],
        out_specs=(pl.BlockSpec((Cb, Kq, D), lambda i: (i, 0, 0)),
                   pl.BlockSpec((Cb, H, Kq, K), lambda i: (i, 0, 0, 0))),
        out_shape=(jax.ShapeDtypeStruct((BC, Kq, D), jnp.float32),
                   jax.ShapeDtypeStruct((BC, H, Kq, K), jnp.float32)),
        compiler_params=pltpu.CompilerParams(
            dimension_semantics=("parallel",),
            vmem_limit_bytes=_VMEM_LIMIT_BYTES),
    )(qu, k, v, bias, wo, bo.reshape(1, D))
    return out, att


# ------------------------------ JAX glue --------------------------------------

def relative_sinusoidal_pos_encoding(max_len, dim_model):
    """Matches RelativeSinusoidalPositionalEncoding buffer: (1, 2*max_len-1, D)."""
    pos_left = jnp.arange(max_len - 1, 0, -1, dtype=jnp.float32)
    pos_right = jnp.arange(0, -max_len, -1, dtype=jnp.float32)
    pos = jnp.concatenate([pos_left, pos_right], axis=0)[:, None]
    inv = 10000.0 ** (2.0 * jnp.arange(dim_model // 2,
                                       dtype=jnp.float32)[None, :] / dim_model)
    angles = pos / inv
    pe = jnp.zeros((2 * max_len - 1, dim_model), jnp.float32)
    pe = pe.at[:, 0::2].set(jnp.sin(angles))
    pe = pe.at[:, 1::2].set(jnp.cos(angles))
    return pe[None]


def rel_to_abs_strided(x, kernel_size, stride, causal):
    """Exact port of StridedLocalRelPosMultiHeadSelfAttention.rel_to_abs."""
    B, H, T1, T2 = x.shape
    K, S = kernel_size, stride
    Kq = K // S
    if causal:
        x = x.reshape(B, -1, H, Kq, K)
        x = jnp.pad(x, ((0, 0),) * 4 + ((1, S - 1),))
        x = x.reshape(B, -1, H, Kq + 1, K)
        return x[:, :, :, 1:]
    else:
        x = x.reshape(B, -1, H, Kq, T2)
        x = jnp.pad(x, ((0, 0),) * 4 + ((0, S),))
        x = x.reshape(B, -1, H, Kq * (2 * K - 1 + S))
        x = jnp.pad(x, ((0, 0),) * 3 + ((0, K - 1),))
        x = x.reshape(B, -1, H, Kq + 1, T2)
        return x[:, :, :, :Kq, K - 1:]


def strided_local_relpos_mhsa_forward(params, query, key, value, *,
                                      num_heads, kernel_size, stride, causal):
    B, T, D = query.shape
    H = num_heads
    d = D // H
    K, S = kernel_size, stride
    Kq = K // S
    scale = 1.0 / math.sqrt(d)

    # pad to a multiple of kernel_size (mask=None path)
    overflow = T % K
    padding = K - overflow if overflow else 0
    if padding:
        query = jnp.pad(query, ((0, 0), (0, padding), (0, 0)))
        key = jnp.pad(key, ((0, 0), (0, padding), (0, 0)))
        value = jnp.pad(value, ((0, 0), (0, padding), (0, 0)))
        # TODO(synk): mask construction/application for padded or masked inputs
        # (the chunked mask-stacking branch) is not implemented here.
    Tp = query.shape[1]
    C = Tp // K
    Ts = Tp // S

    # Fold "+ u" and the 1/sqrt(d) score scale into the query projection:
    #   (x @ Wq + bq + u) * scale == x @ (Wq*scale) + (bq + u)*scale.
    # The scale multiplies both the Q.K^T and the rel-pos terms (both built
    # from this tensor), matching the reference's (scoresK + scoresE)/sqrt(d).
    # Note: params['v'] is intentionally unused downstream, replicating the
    # original module's Qu/Qv reassignment.
    wq_eff = params['wq'] * scale
    bq_eff = (params['bq'] + params['u']) * scale
    Qu0 = pallas_linear(query[:, ::S], wq_eff, bq_eff)             # (B, Ts, D)

    k = pallas_linear(key, params['wk'], params['bk'])             # (B, Tp, D)
    v = pallas_linear(value, params['wv'], params['bv'])           # (B, Tp, D)

    # relative positional encodings: identical for every batch -> compute once
    R = params['pos_enc'][:, :K] if causal else params['pos_enc']  # (1, L, D)
    E = pallas_linear(R, params['wp'], params['bp'])               # (1, L, D)

    # relative scores Qv @ E^T with heads split inside the kernel (no transposes)
    scoresE_rel = pallas_rel_scores(Qu0, E, num_heads=H)           # (B, H, Ts, L)
    scoresE = rel_to_abs_strided(scoresE_rel, K, S, causal)        # (B, C, H, Kq, K)

    # Scrambled Qu exactly as the reference module computes it (reshape of an
    # already-transposed tensor); this is the only remaining XLA transpose.
    QuT = jnp.transpose(Qu0.reshape(B, Ts, H, d), (0, 2, 1, 3))    # (B, H, Ts, d)
    Qu = QuT.reshape(B * C, Kq, H * d)                             # free reshape

    k_ch = k.reshape(B * C, K, D)                                  # free reshapes
    v_ch = v.reshape(B * C, K, D)
    bias = scoresE.reshape(B * C, H, Kq, K)

    # attention + fused output projection; per-row trim commutes with the
    # linear output projection, so projecting before the trim is equivalent.
    out_ch, att_ch = pallas_local_attention(
        Qu, k_ch, v_ch, bias, params['wo'], params['bo'], num_heads=H)

    out = out_ch.reshape(B, C * Kq, D)                             # free reshape
    out = out[:, :((S * out.shape[1] - padding - 1) // S + 1)]
    att_w = att_ch.reshape(B, C, H, Kq, K)
    return out, att_w, None


# ----------------------- pure-JAX reference (direct port) --------------------

def ref_forward(params, query, key, value, *, num_heads, kernel_size, stride, causal):
    B, T, Dm = query.shape
    H = num_heads
    d = Dm // H
    K, S = kernel_size, stride
    Kq = K // S
    overflow = T % K
    padding = K - overflow if overflow else 0
    query = jnp.pad(query, ((0, 0), (0, padding), (0, 0)))
    key = jnp.pad(key, ((0, 0), (0, padding), (0, 0)))
    value = jnp.pad(value, ((0, 0), (0, padding), (0, 0)))
    query = query[:, ::S]
    q = query @ params['wq'] + params['bq']
    k = key @ params['wk'] + params['bk']
    v = value @ params['wv'] + params['bv']
    Qu = q + params['u']
    _Qv = q + params['v']                       # dead, as in the original module
    R = params['pos_enc'][:, :K] if causal else params['pos_enc']
    R = jnp.tile(R, (B, 1, 1))
    E = R @ params['wp'] + params['bp']
    Qv = jnp.transpose(Qu.reshape(B, -1, H, d), (0, 2, 1, 3))          # uses Qu (module bug)
    Qu = jnp.transpose(Qv.reshape(B, -1, Kq, H, d), (0, 1, 3, 2, 4))
    key5 = jnp.transpose(k.reshape(B, -1, K, H, d), (0, 1, 3, 2, 4))
    val5 = jnp.transpose(v.reshape(B, -1, K, H, d), (0, 1, 3, 2, 4))
    E4 = jnp.transpose(E.reshape(B, -1, H, d), (0, 2, 1, 3))
    scores_K = jnp.einsum('bchqd,bchkd->bchqk', Qu, key5)
    scores_E = rel_to_abs_strided(jnp.einsum('bhtd,bhld->bhtl', Qv, E4),
                                  K, S, causal)
    scores = (scores_K + scores_E) / math.sqrt(d)
    att_w = jax.nn.softmax(scores, axis=-1)
    out = jnp.einsum('bchqk,bchkd->bchqd', att_w, val5)
    out = jnp.transpose(out, (0, 1, 3, 2, 4)).reshape(B, -1, Dm)
    out = out[:, :((S * out.shape[1] - padding - 1) // S + 1)]
    out = out @ params['wo'] + params['bo']
    return out, att_w


# --------------------------------- main ---------------------------------------

if __name__ == "__main__":
    B, T, D, H = 2, 16, 32, 4
    K, S = 8, 2          # kernel_size, stride  (K % S == 0, T % K == 0)
    causal = False
    d = D // H

    rng = jax.random.PRNGKey(0)
    keys = jax.random.split(rng, 16)

    def lin_init(kw, kb, din, dout):
        lim = math.sqrt(1.0 / din)
        w = jax.random.uniform(kw, (din, dout), jnp.float32, -lim, lim)
        b = jax.random.uniform(kb, (dout,), jnp.float32, -lim, lim)
        return w, b

    wq, bq = lin_init(keys[0], keys[1], D, D)
    wk, bk = lin_init(keys[2], keys[3], D, D)
    wv, bv = lin_init(keys[4], keys[5], D, D)
    wo, bo = lin_init(keys[6], keys[7], D, D)
    wp, bp = lin_init(keys[8], keys[9], D, D)
    lim_uv = math.sqrt(6.0 / (H + d))
    u_param = jax.random.uniform(keys[10], (D,), jnp.float32, -lim_uv, lim_uv)
    v_param = jax.random.uniform(keys[11], (D,), jnp.float32, -lim_uv, lim_uv)

    params = dict(wq=wq, bq=bq, wk=wk, bk=bk, wv=wv, bv=bv,
                  wo=wo, bo=bo, wp=wp, bp=bp, u=u_param, v=v_param,
                  pos_enc=relative_sinusoidal_pos_encoding(K, D))

    x = jax.random.normal(keys[12], (B, T, D), jnp.float32)

    out, att_w, hidden = strided_local_relpos_mhsa_forward(
        params, x, x, x,
        num_heads=H, kernel_size=K, stride=S, causal=causal)
    out = jax.block_until_ready(out)
    att_w = jax.block_until_ready(att_w)

    # direct pure-JAX port of the PyTorch module as reference
    ref_out, ref_att = ref_forward(
        params, x, x, x,
        num_heads=H, kernel_size=K, stride=S, causal=causal)

    assert out.shape == (B, T // S, D), out.shape
    assert att_w.shape == (B, T // K, H, K // S, K), att_w.shape
    # bf16 MXU operands + approximate reciprocal => slightly looser tolerances
    assert jnp.allclose(out, ref_out, atol=1e-2, rtol=1e-2), \
        float(jnp.max(jnp.abs(out - ref_out)))
    assert jnp.allclose(att_w, ref_att, atol=1e-2, rtol=1e-2), \
        float(jnp.max(jnp.abs(att_w - ref_att)))

    print("KERNEL_OK")
</pallas_src>

<mosaic_0001>
module attributes {stable_mosaic.version = 11 : i64} {
  func.func @_linear_kernel(%arg0: i32, %arg1: memref<16x32xf32, #tpu.memory_space<vmem>>, %arg2: memref<32x32xf32, #tpu.memory_space<vmem>>, %arg3: memref<1x32xf32, #tpu.memory_space<vmem>>, %arg4: memref<16x32xf32, #tpu.memory_space<vmem>>) attributes {dimension_semantics = [#tpu.dimension_semantics<parallel>], iteration_bounds = array<i64: 1>, scalar_prefetch = 0 : i64, scratch_operands = 0 : i64, tpu.core_type = #tpu.core_type<tc>, window_params = [{transform_indices = @transform_0, window_bounds = array<i64: 16, 32>}, {pipeline_mode = #tpu.pipeline_mode<synchronous>, transform_indices = @transform_1, window_bounds = array<i64: 32, 32>}, {pipeline_mode = #tpu.pipeline_mode<synchronous>, transform_indices = @transform_2, window_bounds = array<i64: 1, 32>}, {transform_indices = @transform_3, window_bounds = array<i64: 16, 32>}]} {
    %c0 = arith.constant 0 : index
    %c0_0 = arith.constant 0 : index
    %0 = vector.load %arg1[%c0, %c0_0] : memref<16x32xf32, #tpu.memory_space<vmem>>, vector<16x32xf32>
    %c0_1 = arith.constant 0 : index
    %c0_2 = arith.constant 0 : index
    %1 = vector.load %arg2[%c0_1, %c0_2] : memref<32x32xf32, #tpu.memory_space<vmem>>, vector<32x32xf32>
    %cst = arith.constant dense<0.000000e+00> : vector<16x32xf32>
    %2 = tpu.matmul %0, %1, %cst {dimension_numbers = #tpu.dot_dimension_numbers<[1], [0], [0], [1], [0, 0, 1, 1], [], []>} : vector<16x32xf32>, vector<32x32xf32>, vector<16x32xf32> -> vector<16x32xf32>
    %c0_3 = arith.constant 0 : index
    %c0_4 = arith.constant 0 : index
    %3 = vector.load %arg3[%c0_3, %c0_4] : memref<1x32xf32, #tpu.memory_space<vmem>>, vector<1x32xf32>
    %4 = vector.broadcast %3 : vector<1x32xf32> to vector<16x32xf32>
    %5 = arith.addf %2, %4 : vector<16x32xf32>
    %c0_5 = arith.constant 0 : index
    %c0_6 = arith.constant 0 : index
    %6 = vector.load %arg4[%c0_5, %c0_6] : memref<16x32xf32, #tpu.memory_space<vmem>>, vector<16x32xf32>
    tpu.vector_store %arg4[%c0_5, %c0_6], %5 {strides = array<i32>} : memref<16x32xf32, #tpu.memory_space<vmem>>, vector<16x32xf32>,
    return
  }
  func.func @transform_0(%arg0: i32) -> (i32, i32) {
    %c0_i32 = arith.constant 0 : i32
    %c0_i32_0 = arith.constant 0 : i32
    return %arg0, %c0_i32 : i32, i32
  }
  func.func @transform_1(%arg0: i32) -> (i32, i32) {
    %c0_i32 = arith.constant 0 : i32
    %c0_i32_0 = arith.constant 0 : i32
    %c0_i32_1 = arith.constant 0 : i32
    return %c0_i32, %c0_i32_0 : i32, i32
  }
  func.func @transform_2(%arg0: i32) -> (i32, i32) {
    %c0_i32 = arith.constant 0 : i32
    %c0_i32_0 = arith.constant 0 : i32
    %c0_i32_1 = arith.constant 0 : i32
    return %c0_i32, %c0_i32_0 : i32, i32
  }
  func.func @transform_3(%arg0: i32) -> (i32, i32) {
    %c0_i32 = arith.constant 0 : i32
    %c0_i32_0 = arith.constant 0 : i32
    return %arg0, %c0_i32 : i32, i32
  }
}

</mosaic_0001>

<llo_original>
// kernel: tpu_custom_call.1
$region0: #{tpu_custom_call.1}
  #allocation0 [shape = 'u32[]', space=smem, size = 0x4, offset = 0x4, fixed_abs, tag = 'smem constant byte address 0x4 - core index']
  #allocation1 [shape = 'u32[144,128]{1,0:T(1,128)}', space=vmem, size = 0x12000, scoped, tag = 'internal scratch']
  %s0 = inlined_call_operand.hbm [shape: f32[16,32], index: 0, kind: input, shape index: {}]
  %s1 = inlined_call_operand.hbm [shape: f32[32,32], index: 1, kind: input, shape index: {}]
  %s2 = inlined_call_operand.vmem [shape: f32[1,32], index: 2, kind: input, shape index: {}]
  %s3 = inlined_call_operand.hbm [shape: f32[16,32], index: 3, kind: output, shape index: {}]
  %s4 = sld [smem:[#allocation0]]
  $region30: #{tpu_custom_call.1} parent=0
    _
  %s6 = ssub.s32 1, %s4
  %s7 = scalar_select 0, %s6, %s4
  $region1: #{tpu_custom_call.1} parent=0
    #allocation2 [shape = 'u8[8192]{0}', space=vmem, size = 0x2000, scoped, tag = 'input window, operand 0, single buffered']
    #allocation3 [shape = 's32[1]{0}', space=sflag, size = 0x4, scoped, tag = 'scoped memory for tpu_custom_call.1']
    #allocation4 [shape = 's32[1]{0}', space=sflag, size = 0x4, scoped, tag = 'scoped memory for tpu_custom_call.1']
    #allocation5 [shape = 'u8[16384]{0}', space=vmem, size = 0x4000, scoped, tag = 'input window, operand 1, single buffered']
    #allocation6 [shape = 's32[1]{0}', space=sflag, size = 0x4, scoped, tag = 'scoped memory for tpu_custom_call.1']
    #allocation7 [shape = 'u8[8192]{0}', space=vmem, size = 0x2000, scoped, tag = 'output window, operand 0, single buffered']
    %8 = vsyncpa [#allocation3], 0
    %9 = vsyncpa [#allocation6], 0
    %10 = vsyncpa [#allocation4], 0
    // Predicated region
    $region2: #{tpu_custom_call.1} parent=1 // pred_check
      _
    $region3: #{tpu_custom_call.1} parent=1 // pred_check_branch
      %12 = sbr.rel (0) target = $region5
    $region4: #{tpu_custom_call.1} parent=1 // pred_region
      %s14 = ssub.s32 256, 256
      %15 = vsyncadd [#allocation3], %s14
      %s16 = sshll.u32 [#allocation2], 4
      %s17 = int_to_ptr.vmem [resolvable:$true] %s16
      %22 = dma.hbm_to_vmem [thread:$0]  %s0, 256, %s17, [#allocation3], 128, 128, 8
    $region5: #{tpu_custom_call.1} parent=1 // pred_fallthru
      _
    // Predicated region
    $region6: #{tpu_custom_call.1} parent=1 // pred_check
      _
    $region7: #{tpu_custom_call.1} parent=1 // pred_check_branch
      %24 = sbr.rel (0) target = $region9
    $region8: #{tpu_custom_call.1} parent=1 // pred_region
      %s26 = ssub.s32 512, 512
      %27 = vsyncadd [#allocation6], %s26
      %s28 = sshll.u32 [#allocation5], 4
      %s29 = int_to_ptr.vmem [resolvable:$true] %s28
      %34 = dma.hbm_to_vmem [thread:$0]  %s1, 512, %s29, [#allocation6], 128, 128, 8
    $region9: #{tpu_custom_call.1} parent=1 // pred_fallthru
      _
    // Predicated region
    $region10: #{tpu_custom_call.1} parent=1 // pred_check
      _
    $region11: #{tpu_custom_call.1} parent=1 // pred_check_branch
      %36 = sbr.rel (0) target = $region13
    $region12: #{tpu_custom_call.1} parent=1 // pred_region
      _
    $region13: #{tpu_custom_call.1} parent=1 // pred_fallthru
      _
    // Predicated region
    $region14: #{tpu_custom_call.1} parent=1 // pred_check
      _
    $region15: #{tpu_custom_call.1} parent=1 // pred_check_branch
      %38 = sbr.rel (0) target = $region17
    $region16: #{tpu_custom_call.1} parent=1 // pred_region
      %39 = dma.done [#allocation3], 256
    $region17: #{tpu_custom_call.1} parent=1 // pred_fallthru
      _
    // Predicated region
    $region18: #{tpu_custom_call.1} parent=1 // pred_check
      _
    $region19: #{tpu_custom_call.1} parent=1 // pred_check_branch
      %41 = sbr.rel (0) target = $region21
    $region20: #{tpu_custom_call.1} parent=1 // pred_region
      %42 = dma.done [#allocation6], 512
    $region21: #{tpu_custom_call.1} parent=1 // pred_fallthru
      _
    %v43 = vld [vmem:[#allocation2] sm:$0xff]
    %v44 = vld [vmem:[#allocation2 + $0x8] sm:$0xff]
    %v45 = vld [vmem:[#allocation5] sm:$0xff]
    %v46 = vld [vmem:[#allocation5 + $0x8] sm:$0xff]
    %v47 = vld [vmem:[#allocation5 + $0x10] sm:$0xff]
    %v48 = vld [vmem:[#allocation5 + $0x18] sm:$0xff]
    %v49 = vld [vmem:[%s2] sm:$0x1]
    %v51 = vlaneseq
    %v52 = vshrl.u32 %v51, 7
    %v53 = vsub.s32 0, %v52
    %v54 = vrot.slane %v49, %v53
    %vm56 = vcmask 261120
    %v58 = vsel %vm56, %v43, 0
    %v61 = vsel %vm56, %v44, 0
    %63 = vmatprep.subr.mxu0 0.0
    %64 = vmatpush1.msra.mxu0 0.0
    %65 = vmatprep.subr.mxu0 0.0
    %66 = vmatpush1.msra.mxu0 0.0
    %67 = vmatprep.subr.mxu0 0.0
    %68 = vmatpush1.msra.mxu0 0.0
    %69 = vmatprep.subr.mxu0 0.0
    %70 = vmatpush1.msra.mxu0 0.0
    %71 = vmatprep.subr.mxu0 0.0
    %72 = vmatpush1.msra.mxu0 0.0
    %73 = vmatprep.subr.mxu0 0.0
    %74 = vmatpush1.msra.mxu0 0.0
    %75 = vmatprep.subr.mxu0 0.0
    %76 = vmatpush1.msra.mxu0 0.0
    %77 = vmatprep.subr.mxu0 0.0
    %78 = vmatpush1.msra.mxu0 0.0
    %79 = vmatprep.subr.mxu0 0.0
    %80 = vmatpush1.msra.mxu0 0.0
    %81 = vmatprep.subr.mxu0 0.0
    %82 = vmatpush1.msra.mxu0 0.0
    %83 = vmatprep.subr.mxu0 0.0
    %84 = vmatpush1.msra.mxu0 0.0
    %85 = vmatprep.subr.mxu0 0.0
    %86 = vmatpush1.msra.mxu0 0.0
    %87 = vmatprep.subr.mxu0 0.0
    %88 = vmatpush1.msra.mxu0 %v48
    %89 = vmatprep.subr.mxu0 0.0
    %90 = vmatpush1.msra.mxu0 %v47
    %91 = vmatprep.subr.mxu0 0.0
    %92 = vmatpush1.msra.mxu0 %v46
    %93 = vmatprep.subr.mxu0 0.0
    %94 = vmatpush1.msra.mxu0 %v45
    %95 = vmatprep.subr.mxu0 0.0
    %96 = vmatpush2.msra.mxu0 0.0
    %97 = vmatprep.subr.mxu0 0.0
    %98 = vmatpush2.msra.mxu0 0.0
    %99 = vmatprep.subr.mxu0 0.0
    %100 = vmatpush2.msra.mxu0 0.0
    %101 = vmatprep.subr.mxu0 0.0
    %102 = vmatpush2.msra.mxu0 0.0
    %103 = vmatprep.subr.mxu0 0.0
    %104 = vmatpush2.msra.mxu0 0.0
    %105 = vmatprep.subr.mxu0 0.0
    %106 = vmatpush2.msra.mxu0 0.0
    %107 = vmatprep.subr.mxu0 0.0
    %108 = vmatpush2.msra.mxu0 0.0
    %109 = vmatprep.subr.mxu0 0.0
    %110 = vmatpush2.msra.mxu0 0.0
    %111 = vmatprep.subr.mxu0 0.0
    %112 = vmatpush2.msra.mxu0 0.0
    %113 = vmatprep.subr.mxu0 0.0
    %114 = vmatpush2.msra.mxu0 0.0
    %115 = vmatprep.subr.mxu0 0.0
    %116 = vmatpush2.msra.mxu0 0.0
    %117 = vmatprep.subr.mxu0 0.0
    %118 = vmatpush2.msra.mxu0 0.0
    %119 = vmatprep.subr.mxu0 0.0
    %120 = vmatpush2.msra.mxu0 0.0
    %121 = vmatprep.subr.mxu0 0.0
    %122 = vmatpush2.msra.mxu0 0.0
    %123 = vmatprep.subr.mxu0 0.0
    %124 = vmatpush2.msra.mxu0 0.0
    %125 = vmatprep.subr.mxu0 0.0
    %126 = vmatpush2.msra.mxu0 0.0
    %127 = vmatprep.mubr.f32.mxu0 0.0
    %128 = vmatmul.mubr.f32.gmra.mxu0 %v58
    %v129 = vpop.f32.mrf.mxu0
    %v130 = vadd.f32 %v54, %v129
    %v131 = vpop.f32.mrf.mxu0
    %132 = vmatprep.mubr.f32.mxu0 0.0
    %133 = vmatmul.mubr.f32.gmra.mxu0 %v61
    %v134 = vpop.f32.mrf.mxu0
    %v135 = vadd.f32 %v54, %v134
    %v136 = vpop.f32.mrf.mxu0
    %137 = vdwg.mxu0
    %138 = vst.msk [vmem:[#allocation7] sm:$0xff] %vm56, %v130
    %139 = vst.msk [vmem:[#allocation7 + $0x8] sm:$0xff] %vm56, %v135
    // Predicated region
    $region22: #{tpu_custom_call.1} parent=1 // pred_check
      _
    $region23: #{tpu_custom_call.1} parent=1 // pred_check_branch
      %141 = sbr.rel (0) target = $region25
    $region24: #{tpu_custom_call.1} parent=1 // pred_region
      %s143 = ssub.s32 256, 256
      %144 = vsyncadd [#allocation4], %s143
      %s145 = sshll.u32 [#allocation7], 4
      %s146 = int_to_ptr.vmem [resolvable:$true] %s145
      %151 = dma.vmem_to_hbm [thread:$0]  %s146, 256, %s3, [#allocation4], 128, 128, 8
    $region25: #{tpu_custom_call.1} parent=1 // pred_fallthru
      _
    // Predicated region
    $region26: #{tpu_custom_call.1} parent=1 // pred_check
      _
    $region27: #{tpu_custom_call.1} parent=1 // pred_check_branch
      %153 = sbr.rel (0) target = $region29
    $region28: #{tpu_custom_call.1} parent=1 // pred_region
      %154 = dma.done [#allocation4], 256
    $region29: #{tpu_custom_call.1} parent=1 // pred_fallthru
      _
    %155 = vsyncpa [#allocation3], 1
    %156 = vsyncpa [#allocation6], 1
    %157 = vsyncpa [#allocation4], 1

</llo_original>
